<compile_context>
chip_gen: v5e
topology: v5e:2x2
jax: 0.10.0
libtpu: 0.0.40
codegen_flags: <defaults>
</compile_context>

<pallas_src>
import functools

import jax
import jax.numpy as jnp
from jax.experimental import pallas as pl
from jax.experimental.pallas import tpu as pltpu

EPS = 1e-5


# ---------------------------------------------------------------------------
# helpers
# ---------------------------------------------------------------------------
def _cmul(w, x, use_mxu):
    """Channel contraction (Cout, Cin) x (Cin, L) -> (Cout, L), f32.

    Tiny contractions (Cin < 16) use exact VPU broadcast-FMAs; larger ones go
    to the MXU.
    """
    if use_mxu:
        return jnp.dot(w, x, preferred_element_type=jnp.float32)
    cout, cin = w.shape
    acc = jnp.zeros((cout, x.shape[1]), jnp.float32)
    for ci in range(cin):
        acc = acc + w[:, ci:ci + 1] * x[ci:ci + 1, :]
    return acc


@functools.lru_cache(maxsize=1)
def _roll_matches_jnp():
    """One-off cached probe of pltpu.roll's rotation direction (defensive).

    Runs a single tiny pallas_call the first time it is called (outside jit)
    and is a pure Python bool afterwards.
    """
    def k(x_ref, o_ref):
        o_ref[...] = pltpu.roll(x_ref[...], 1, axis=1)

    x = jax.lax.broadcasted_iota(jnp.float32, (8, 128), 1)
    y = pl.pallas_call(k, out_shape=jax.ShapeDtypeStruct((8, 128), jnp.float32))(x)
    # jnp.roll convention: the element at index 0 moves to index 1.
    return bool(y[0, 1] == 0.0)


def _pick_batch_block(n, bytes_per_sample, budget=8 << 20):
    """Largest batch block that divides N, keeps >= 2 grid steps when N > 1
    (so both v7x TensorCores get work) and stays ~<= `budget` bytes per block
    (well under v7x's 64 MiB VMEM even with double buffering)."""
    if n <= 1:
        return max(n, 1)
    nb = max(1, min(n // 2, budget // max(bytes_per_sample, 1)))
    while n % nb:
        nb -= 1
    return nb


# ---------------------------------------------------------------------------
# kernels
# ---------------------------------------------------------------------------
def _bn1_conv1_kernel(x_ref, bn1_ref, w1_ref, h_ref, hst_ref, *,
                      inv_hw, eps, use_mxu):
    # x_ref : (Nb, Cin, HW)    bn1_ref: (Cin, 4) cols [mean, var, gamma, beta]
    # w1_ref: (Cmid, Cin)      h_ref  : (Nb, Cmid, HW)
    # hst_ref: (Nb, Cmid, 2) per-sample [sum, M2] partial stats of h (for BN2)
    mean = bn1_ref[:, 0:1]
    var = bn1_ref[:, 1:2]
    scale = bn1_ref[:, 2:3] * jax.lax.rsqrt(var + eps)   # gamma * rsqrt (EUP)
    shift = bn1_ref[:, 3:4] - mean * scale
    w1 = w1_ref[...]
    for b in range(x_ref.shape[0]):                      # static, small
        xn = jnp.maximum(x_ref[b] * scale + shift, 0.0)  # BN1 + ReLU
        h = _cmul(w1, xn, use_mxu)                       # 1x1 conv, (Cmid, HW)
        h_ref[b] = h
        s = jnp.sum(h, axis=1, keepdims=True)            # (Cmid, 1)
        d = h - s * inv_hw                               # centered (per-sample)
        hst_ref[b, :, 0:1] = s
        hst_ref[b, :, 1:2] = jnp.sum(d * d, axis=1, keepdims=True)


def _bn2_conv2_cat_kernel(x_ref, h_ref, hst_ref, gb2_ref, w2_ref, out_ref, *,
                          H, W, hw, inv_hw, inv_cnt, eps, use_mxu,
                          roll_like_jnp):
    # x_ref  : (Nb, Cin,  HW)      h_ref : (Nb, Cmid, HW)
    # hst_ref: (N,  Cmid, 2)  per-sample [sum, M2] partials of h
    # gb2_ref: (Cmid, 2) [gamma, beta]      w2_ref: (Cg, 9*Cmid) tap-major
    # out_ref: (Nb, Cin + Cg, HW)
    Nb, Cin, HW = x_ref.shape
    Cmid = h_ref.shape[1]
    Cg = w2_ref.shape[0]

    # ---- BN2 fold: Chan/Welford combine of per-sample partials (in-kernel,
    # rsqrt lands in the otherwise idle EUP slot). ----------------------------
    st = hst_ref[...]                                   # (N, Cmid, 2)
    tile_sum = st[:, :, 0:1]                            # (N, Cmid, 1)
    tile_m2 = st[:, :, 1:2]                             # (N, Cmid, 1)
    mean = jnp.sum(tile_sum, axis=0) * inv_cnt          # (Cmid, 1) global mean
    dev = tile_sum * inv_hw - mean                      # per-sample mean - global
    m2 = jnp.sum(tile_m2, axis=0) + hw * jnp.sum(dev * dev, axis=0)
    var = jnp.maximum(m2 * inv_cnt, 0.0)                # biased batch variance
    scale = gb2_ref[:, 0:1] * jax.lax.rsqrt(var + eps)  # (Cmid, 1)
    shift = gb2_ref[:, 1:2] - mean * scale

    # ---- hoisted 3x3 boundary masks (one f32 multiplier per off-center tap) -
    pos = jax.lax.broadcasted_iota(jnp.int32, (1, HW), 1)
    row = pos // W
    col = pos - row * W
    taps_cfg = []
    for dh in (-1, 0, 1):
        for dw in (-1, 0, 1):
            if dh == 0 and dw == 0:
                taps_cfg.append((0, None))
                continue
            ok = ((row + dh >= 0) & (row + dh < H)
                  & (col + dw >= 0) & (col + dw < W))
            s = dh * W + dw                              # flattened-lane shift
            amt = (-s) % HW if roll_like_jnp else s % HW
            taps_cfg.append((amt, ok.astype(jnp.float32)))

    for b in range(Nb):                                  # static, small
        hn = jnp.maximum(h_ref[b] * scale + shift, 0.0)  # BN2 + ReLU, (Cmid, HW)
        taps = [hn if m is None else pltpu.roll(hn, amt, axis=1) * m
                for amt, m in taps_cfg]
        if use_mxu:
            # Stack the 9 taps (sublane-aligned copies, Cmid % 8 == 0) and do
            # one K = 9*Cmid matmul on the MXU instead of 9*Cmid VPU FMAs.
            stacked = jnp.concatenate(taps, axis=0)      # (9*Cmid, HW)
            acc = jnp.dot(w2_ref[...], stacked,
                          preferred_element_type=jnp.float32)   # (Cg, HW)
        else:
            acc = jnp.zeros((Cg, HW), jnp.float32)
            for t, tap in enumerate(taps):
                acc = acc + _cmul(w2_ref[:, t * Cmid:(t + 1) * Cmid], tap, False)

        # torch.cat([x, out], dim=1), fused into the lane-dense output store.
        out_ref[b, 0:Cin, :] = x_ref[b]
        out_ref[b, Cin:Cin + Cg, :] = acc


# ---------------------------------------------------------------------------
# wrapper
# ---------------------------------------------------------------------------
@functools.partial(jax.jit, static_argnames=("roll_like_jnp", "eps"))
def _forward_impl(x, conv1_w, conv2_w, g1, b1, g2, b2, *, roll_like_jnp, eps):
    N, Cin, H, W = x.shape
    Cmid, Cg = conv1_w.shape[0], conv2_w.shape[0]
    HW = H * W

    # NCHW -> (N, C, H*W): free reshape; H*W becomes the dense lane axis.
    x3 = x.reshape(N, Cin, HW).astype(jnp.float32)
    w1 = conv1_w[:, :, 0, 0].astype(jnp.float32)                     # (Cmid, Cin)
    # tap-major flattened conv2 weights: w2[o, (kh*3+kw)*Cmid + c]
    w2 = jnp.transpose(conv2_w, (0, 2, 3, 1)).reshape(Cg, 9 * Cmid)
    w2 = w2.astype(jnp.float32)

    # BN1 batch statistics: tiny two-pass jnp reduction, fused by XLA ahead of
    # pass 1 (no dedicated stats kernel).  Channels live on the sublane axis so
    # the kernel gets (Cin, 1) column vectors without an in-kernel transpose.
    mean1 = jnp.mean(x3, axis=(0, 2))
    var1 = jnp.mean(jnp.square(x3 - mean1[None, :, None]), axis=(0, 2))
    bn1 = jnp.stack([mean1, var1, g1.astype(jnp.float32),
                     b1.astype(jnp.float32)], axis=1)                # (Cin, 4)
    gb2 = jnp.stack([g2.astype(jnp.float32), b2.astype(jnp.float32)],
                    axis=1)                                          # (Cmid, 2)

    bytes_per_sample = (2 * Cin + 2 * Cmid + Cg) * HW * 4
    nb = _pick_batch_block(N, bytes_per_sample)
    grid = (N // nb,)
    parallel = pltpu.CompilerParams(dimension_semantics=("parallel",))

    # ---- pass 1: h = conv1(relu(bn1(x))) + per-sample BN2 partial stats -----
    h, hstats = pl.pallas_call(
        functools.partial(_bn1_conv1_kernel, inv_hw=1.0 / HW, eps=eps,
                          use_mxu=Cin >= 16),
        out_shape=(jax.ShapeDtypeStruct((N, Cmid, HW), jnp.float32),
                   jax.ShapeDtypeStruct((N, Cmid, 2), jnp.float32)),
        grid=grid,
        in_specs=[pl.BlockSpec((nb, Cin, HW), lambda i: (i, 0, 0)),
                  pl.BlockSpec((Cin, 4), lambda i: (0, 0)),
                  pl.BlockSpec((Cmid, Cin), lambda i: (0, 0))],
        out_specs=(pl.BlockSpec((nb, Cmid, HW), lambda i: (i, 0, 0)),
                   pl.BlockSpec((nb, Cmid, 2), lambda i: (i, 0, 0))),
        compiler_params=parallel,
    )(x3, bn1, w1)

    # ---- pass 2: out = conv2(relu(bn2(h))); concat([x, out]) ----------------
    out3 = pl.pallas_call(
        functools.partial(_bn2_conv2_cat_kernel, H=H, W=W, hw=float(HW),
                          inv_hw=1.0 / HW, inv_cnt=1.0 / (N * HW), eps=eps,
                          use_mxu=9 * Cmid >= 64, roll_like_jnp=roll_like_jnp),
        out_shape=jax.ShapeDtypeStruct((N, Cin + Cg, HW), jnp.float32),
        grid=grid,
        in_specs=[pl.BlockSpec((nb, Cin, HW), lambda i: (i, 0, 0)),
                  pl.BlockSpec((nb, Cmid, HW), lambda i: (i, 0, 0)),
                  pl.BlockSpec((N, Cmid, 2), lambda i: (0, 0, 0)),
                  pl.BlockSpec((Cmid, 2), lambda i: (0, 0)),
                  pl.BlockSpec((Cg, 9 * Cmid), lambda i: (0, 0))],
        out_specs=pl.BlockSpec((nb, Cin + Cg, HW), lambda i: (i, 0, 0)),
        compiler_params=parallel,
    )(x3, h, hstats, gb2, w2)

    return out3.reshape(N, Cin + Cg, H, W)


def bottleneck_forward(x, conv1_w, conv2_w, g1, b1, g2, b2, eps=EPS):
    """x: (N, Cin, H, W); conv1_w: (Cmid, Cin, 1, 1); conv2_w: (Cg, Cmid, 3, 3)."""
    return _forward_impl(x, conv1_w, conv2_w, g1, b1, g2, b2,
                         roll_like_jnp=_roll_matches_jnp(), eps=float(eps))


# ---------------------------------------------------------------------------
# pure-JAX reference (mirrors the PyTorch module, training-mode BatchNorm)
# ---------------------------------------------------------------------------
def _reference(x, conv1_w, conv2_w, g1, b1, g2, b2, eps=EPS):
    def bn(t, g, b):
        m = t.mean(axis=(0, 2, 3), keepdims=True)
        v = ((t - m) ** 2).mean(axis=(0, 2, 3), keepdims=True)
        return (t - m) * jax.lax.rsqrt(v + eps) * g.reshape(1, -1, 1, 1) \
            + b.reshape(1, -1, 1, 1)

    h = jnp.maximum(bn(x, g1, b1), 0.0)
    h = jnp.einsum("nchw,oc->nohw", h, conv1_w[:, :, 0, 0],
                   precision=jax.lax.Precision.HIGHEST)
    h = jnp.maximum(bn(h, g2, b2), 0.0)
    dn = jax.lax.conv_dimension_numbers(h.shape, conv2_w.shape,
                                        ("NCHW", "OIHW", "NCHW"))
    out = jax.lax.conv_general_dilated(
        h, conv2_w, window_strides=(1, 1), padding=((1, 1), (1, 1)),
        dimension_numbers=dn, precision=jax.lax.Precision.HIGHEST)
    return jnp.concatenate([x, out], axis=1)


if __name__ == "__main__":
    N, IN_CH, GROWTH, H, W = 2, 4, 8, 16, 16
    CMID, CG = 4 * GROWTH, GROWTH

    key = jax.random.PRNGKey(0)
    kx, k1, k2, kg1, kb1, kg2, kb2 = jax.random.split(key, 7)
    x = jax.random.normal(kx, (N, IN_CH, H, W), dtype=jnp.float32)
    conv1_w = jax.random.normal(k1, (CMID, IN_CH, 1, 1), dtype=jnp.float32) * 0.3
    conv2_w = jax.random.normal(k2, (CG, CMID, 3, 3), dtype=jnp.float32) * 0.2
    # Non-trivial affine params to exercise the folded gamma/beta path.
    g1 = 1.0 + 0.1 * jax.random.normal(kg1, (IN_CH,), dtype=jnp.float32)
    b1 = 0.1 * jax.random.normal(kb1, (IN_CH,), dtype=jnp.float32)
    g2 = 1.0 + 0.1 * jax.random.normal(kg2, (CMID,), dtype=jnp.float32)
    b2 = 0.1 * jax.random.normal(kb2, (CMID,), dtype=jnp.float32)

    out = bottleneck_forward(x, conv1_w, conv2_w, g1, b1, g2, b2)
    out = jax.block_until_ready(out)

    ref = _reference(x, conv1_w, conv2_w, g1, b1, g2, b2)
    assert out.shape == (N, IN_CH + CG, H, W)
    max_err = float(jnp.max(jnp.abs(out - ref)))
    assert max_err < 1e-3, f"max abs error {max_err}"

    print("KERNEL_OK")
</pallas_src>

<mosaic_0001>
module attributes {stable_mosaic.version = 11 : i64} {
  func.func @k(%arg0: memref<8x128xf32, #tpu.memory_space<vmem>>, %arg1: memref<8x128xf32, #tpu.memory_space<vmem>>) attributes {dimension_semantics = [], scalar_prefetch = 0 : i64, scratch_operands = 0 : i64, tpu.core_type = #tpu.core_type<tc>} {
    %c0 = arith.constant 0 : index
    %c0_0 = arith.constant 0 : index
    %0 = vector.load %arg0[%c0, %c0_0] : memref<8x128xf32, #tpu.memory_space<vmem>>, vector<8x128xf32>
    %c1_i32 = arith.constant 1 : i32
    %1 = tpu.dynamic_rotate %0 by %c1_i32 dim 1 : vector<8x128xf32>, i32 -> vector<8x128xf32>
    %c0_1 = arith.constant 0 : index
    %c0_2 = arith.constant 0 : index
    %2 = vector.load %arg1[%c0_1, %c0_2] : memref<8x128xf32, #tpu.memory_space<vmem>>, vector<8x128xf32>
    tpu.vector_store %arg1[%c0_1, %c0_2], %1 {strides = array<i32>} : memref<8x128xf32, #tpu.memory_space<vmem>>, vector<8x128xf32>,
    return
  }
}

</mosaic_0001>

<llo_original>
// kernel: tpu_custom_call.1
$region0: #{tpu_custom_call.1}
  #allocation0 [shape = 'u32[]', space=smem, size = 0x4, offset = 0x4, fixed_abs, tag = 'smem constant byte address 0x4 - core index']
  #allocation1 [shape = 'u32[72,128]{1,0:T(1,128)}', space=vmem, size = 0x9000, scoped, tag = 'internal scratch']
  %s0 = inlined_call_operand.hbm [shape: f32[8,128], index: 0, kind: input, shape index: {}]
  %s1 = inlined_call_operand.hbm [shape: f32[8,128], index: 1, kind: output, shape index: {}]
  %s2 = sld [smem:[#allocation0]]
  $region18: #{tpu_custom_call.1} parent=0
    _
  %s4 = ssub.s32 1, %s2
  %s5 = scalar_select 0, %s4, %s2
  $region1: #{tpu_custom_call.1} parent=0
    #allocation2 [shape = 'u8[4096]{0}', space=vmem, size = 0x1000, scoped, tag = 'input window, operand 0, single buffered']
    #allocation3 [shape = 's32[1]{0}', space=sflag, size = 0x4, scoped, tag = 'scoped memory for tpu_custom_call.1']
    #allocation4 [shape = 's32[1]{0}', space=sflag, size = 0x4, scoped, tag = 'scoped memory for tpu_custom_call.1']
    #allocation5 [shape = 'u8[4096]{0}', space=vmem, size = 0x1000, scoped, tag = 'output window, operand 0, single buffered']
    %6 = vsyncpa [#allocation3], 0
    %7 = vsyncpa [#allocation4], 0
    // Predicated region
    $region2: #{tpu_custom_call.1} parent=1 // pred_check
      _
    $region3: #{tpu_custom_call.1} parent=1 // pred_check_branch
      %9 = sbr.rel (0) target = $region5
    $region4: #{tpu_custom_call.1} parent=1 // pred_region
      %11 = vsyncadd [#allocation3], 0
      %s13 = sshll.u32 %s0, 4
      %s14 = int_to_ptr.hbm [resolvable:$true] %s13
      %s15 = sshll.u32 [#allocation2], 4
      %s16 = int_to_ptr.vmem [resolvable:$true] %s15
      %18 = dma.hbm_to_vmem [thread:$0]  %s14, 128, %s16, [#allocation3]
    $region5: #{tpu_custom_call.1} parent=1 // pred_fallthru
      _
    // Predicated region
    $region6: #{tpu_custom_call.1} parent=1 // pred_check
      _
    $region7: #{tpu_custom_call.1} parent=1 // pred_check_branch
      %20 = sbr.rel (0) target = $region9
    $region8: #{tpu_custom_call.1} parent=1 // pred_region
      %22 = dma.done [#allocation3], 128
    $region9: #{tpu_custom_call.1} parent=1 // pred_fallthru
      _
    %v23 = vld [vmem:[#allocation2] sm:$0xff]
    %24 = vrot.lane.b32.xlu0 %v23, 1
    %v25 = vpop.permute.xlu0 %24
    %26 = vst [vmem:[#allocation5] sm:$0xff] %v25
    // Predicated region
    $region10: #{tpu_custom_call.1} parent=1 // pred_check
      _
    $region11: #{tpu_custom_call.1} parent=1 // pred_check_branch
      %28 = sbr.rel (0) target = $region13
    $region12: #{tpu_custom_call.1} parent=1 // pred_region
      %30 = vsyncadd [#allocation4], 0
      %s32 = sshll.u32 [#allocation5], 4
      %s33 = int_to_ptr.vmem [resolvable:$true] %s32
      %s34 = sshll.u32 %s1, 4
      %s35 = int_to_ptr.hbm [resolvable:$true] %s34
      %37 = dma.vmem_to_hbm [thread:$0]  %s33, 128, %s35, [#allocation4]
    $region13: #{tpu_custom_call.1} parent=1 // pred_fallthru
      _
    // Predicated region
    $region14: #{tpu_custom_call.1} parent=1 // pred_check
      _
    $region15: #{tpu_custom_call.1} parent=1 // pred_check_branch
      %39 = sbr.rel (0) target = $region17
    $region16: #{tpu_custom_call.1} parent=1 // pred_region
      %41 = dma.done [#allocation4], 128
    $region17: #{tpu_custom_call.1} parent=1 // pred_fallthru
      _
    %42 = vsyncpa [#allocation3], 1
    %43 = vsyncpa [#allocation4], 1

</llo_original>
